<compile_context>
chip_gen: v7x
topology: tpu7x:2x2x1
jax: 0.10.0
libtpu: 0.0.40
codegen_flags: <defaults>
</compile_context>

<pallas_src>
import numpy as np
import jax
import jax.numpy as jnp
from jax.experimental import pallas as pl
from jax.experimental.pallas import tpu as pltpu


# ----------------------------------------------------------------------------
# Pallas kernels
# ----------------------------------------------------------------------------

def _full_dist_kernel(x_ref, xt_ref, mrow_ref, mcol_ref, o_ref):
    """Masked pairwise-distance block of _full_dist (one batch, one row tile).

    x_ref:   (1, TM, 3) Ca coords (row block)
    xt_ref:  (1, 3, N)  Ca coords, pre-transposed (lane-dense)
    mrow_ref:(1, TM, 1) row mask;  mcol_ref: (1, 1, N) column mask
    o_ref:   (1, TM, N) D_adjust rows
    """
    a = x_ref[0]                                           # (TM, 3)
    bT = xt_ref[0]                                         # (3, N)  lane-dense
    a2 = jnp.sum(a * a, axis=-1, keepdims=True)            # (TM, 1)
    b2 = jnp.sum(bT * bT, axis=0, keepdims=True)           # (1, N)
    ab = jnp.dot(a, bT, preferred_element_type=jnp.float32)  # MXU, (TM, N)
    d2 = jnp.maximum(a2 + b2 - 2.0 * ab, 0.0)
    mi = mrow_ref[0]                                       # (TM, 1)
    mj = mcol_ref[0]                                       # (1, N)
    m2 = mi * mj
    D = (1.0 - m2) * 10000.0 + m2 * jnp.sqrt(d2 + 1e-6)
    D_max = jnp.max(D, axis=-1, keepdims=True)             # row max (matches torch)
    o_ref[0] = D + (1.0 - m2) * (D_max + 1.0)


def _multi_rbf_kernel(d_ref, o_ref):
    """Fused multi-pair RBF expansion.

    d_ref: (TR, P) distances (one column per atom pair)
    o_ref: (TR, P * num_rbf) features, pair-major (cols p*num_rbf ... for pair p)

    The distance column is expanded to all of its num_rbf output lanes with a
    0/1 expansion matrix on the MXU so the element-wise / exp work is lane
    dense; the store is one dense full-tile store.
    """
    P = d_ref.shape[-1]
    n_out = o_ref.shape[-1]
    nrbf = n_out // P
    d = d_ref[...]                                         # (TR, P)

    # expansion matrix E[p, j] = 1.0  where  j // nrbf == p
    col_pair = jax.lax.broadcasted_iota(jnp.int32, (P, n_out), 1) // nrbf
    row_pair = jax.lax.broadcasted_iota(jnp.int32, (P, n_out), 0)
    expand = (col_pair == row_pair).astype(jnp.float32)    # (P, n_out)
    d_full = jnp.dot(d, expand, preferred_element_type=jnp.float32)  # (TR, n_out)

    # mu[j] = (j % nrbf) * 20 / (nrbf - 1);  sigma = 20 / nrbf  (use a multiply)
    kidx = jax.lax.broadcasted_iota(jnp.int32, (1, n_out), 1) % nrbf
    mu = kidx.astype(jnp.float32) * (20.0 / (nrbf - 1))
    inv_sigma = nrbf / 20.0
    z = (d_full - mu) * inv_sigma
    o_ref[...] = jnp.exp(-(z * z))


# ----------------------------------------------------------------------------
# Pallas wrappers
# ----------------------------------------------------------------------------

def _pick_row_tile(n):
    if n <= 512:
        return n
    for tm in (512, 256, 128, 64, 32, 16, 8):
        if n % tm == 0:
            return tm
    return n


def pallas_full_dist_adjust(X_ca, mask):
    """X_ca: (B, N, 3), mask: (B, N) -> D_adjust (B, N, N) (torch _full_dist)."""
    B, N, _ = X_ca.shape
    Xf = X_ca.astype(jnp.float32)
    XfT = jnp.swapaxes(Xf, -1, -2)                          # (B, 3, N) lane-dense
    m = mask.astype(jnp.float32)
    mrow = m.reshape(B, N, 1)
    mcol = m.reshape(B, 1, N)
    TM = _pick_row_tile(N)
    return pl.pallas_call(
        _full_dist_kernel,
        out_shape=jax.ShapeDtypeStruct((B, N, N), jnp.float32),
        grid=(B, N // TM),
        in_specs=[pl.BlockSpec((1, TM, 3), lambda b, r: (b, r, 0)),
                  pl.BlockSpec((1, 3, N), lambda b, r: (b, 0, 0)),
                  pl.BlockSpec((1, TM, 1), lambda b, r: (b, r, 0)),
                  pl.BlockSpec((1, 1, N), lambda b, r: (b, 0, 0))],
        out_specs=pl.BlockSpec((1, TM, N), lambda b, r: (b, r, 0)),
        compiler_params=pltpu.CompilerParams(
            dimension_semantics=("parallel", "parallel"),
            vmem_limit_bytes=48 * 1024 * 1024),
    )(Xf, XfT, mrow, mcol)


def pallas_multi_rbf(D, num_rbf, max_rows=1024):
    """D: (R, P) distances -> (R, P * num_rbf) RBF features (pair-major)."""
    R, P = D.shape
    Df = D.astype(jnp.float32)
    tr = max_rows if R >= max_rows else max(8, ((R + 7) // 8) * 8)
    Rp = ((R + tr - 1) // tr) * tr
    if Rp != R:
        Df = jnp.pad(Df, ((0, Rp - R), (0, 0)))
    out = pl.pallas_call(
        _multi_rbf_kernel,
        out_shape=jax.ShapeDtypeStruct((Rp, P * num_rbf), jnp.float32),
        grid=(Rp // tr,),
        in_specs=[pl.BlockSpec((tr, P), lambda i: (i, 0))],
        out_specs=pl.BlockSpec((tr, P * num_rbf), lambda i: (i, 0)),
        compiler_params=pltpu.CompilerParams(
            dimension_semantics=("parallel",),
            vmem_limit_bytes=32 * 1024 * 1024),
    )(Df)
    return out[:R]


# ----------------------------------------------------------------------------
# JAX glue helpers (mirroring the PyTorch helpers used by the module)
# ----------------------------------------------------------------------------

def _normalize(x, axis=-1):
    n = jnp.linalg.norm(x, axis=axis, keepdims=True)
    return jnp.where(n > 0, x / jnp.where(n > 0, n, 1.0), 0.0)


def gather_nodes(nodes, E_idx):
    # nodes [B,N,C], E_idx [B,N,K] -> [B,N,K,C]
    return jax.vmap(lambda n, e: n[e])(nodes, E_idx)


def gather_edges(edges, E_idx):
    # edges [B,N,N,C], E_idx [B,N,K] -> [B,N,K,C]
    return jnp.take_along_axis(edges, E_idx[..., None], axis=2)


class Rigid:
    """Minimal rigid-transform container (rot [..,3,3], trans [..,3])."""

    def __init__(self, rot, trans):
        self.rot = rot
        self.trans = trans

    @property
    def _t(self):
        return self.trans

    def __getitem__(self, idx):
        return Rigid(self.rot[idx], self.trans[idx])

    def apply(self, pts):
        return jnp.einsum('...ij,...j->...i', self.rot, pts) + self.trans

    def invert_apply(self, pts):
        return jnp.einsum('...ji,...j->...i', self.rot, pts - self.trans)


def make_frames(X):
    """Gram-Schmidt backbone frames from (N, CA, C); translation = CA."""
    n, ca, c = X[..., 0, :], X[..., 1, :], X[..., 2, :]
    v1 = c - ca
    v2 = n - ca
    e1 = _normalize(v1)
    u2 = v2 - e1 * jnp.sum(e1 * v2, -1, keepdims=True)
    e2 = _normalize(u2)
    e3 = jnp.cross(e1, e2)
    rot = jnp.stack([e1, e2, e3], axis=-1)
    return Rigid(rot, ca)


def _dihedrals(X, eps=1e-7):
    B, N = X.shape[0], X.shape[1]
    Xb = X[:, :, :3, :].reshape(B, 3 * N, 3)
    dX = Xb[:, 1:, :] - Xb[:, :-1, :]
    U = _normalize(dX, -1)
    u_2, u_1, u_0 = U[:, :-2, :], U[:, 1:-1, :], U[:, 2:, :]
    n_2 = _normalize(jnp.cross(u_2, u_1), -1)
    n_1 = _normalize(jnp.cross(u_1, u_0), -1)
    cosD = jnp.clip(jnp.sum(n_2 * n_1, -1), -1 + eps, 1 - eps)
    D = jnp.sign(jnp.sum(u_2 * n_1, -1)) * jnp.arccos(cosD)
    D = jnp.pad(D, ((0, 0), (1, 2))).reshape(B, N, 3)
    dih = jnp.concatenate([jnp.cos(D), jnp.sin(D)], -1)
    cosA = jnp.clip(jnp.sum(u_2 * u_1, -1), -1 + eps, 1 - eps)
    A = jnp.arccos(cosA)
    A = jnp.pad(A, ((0, 0), (1, 2))).reshape(B, N, 3)
    ang = jnp.concatenate([jnp.cos(A), jnp.sin(A)], -1)
    return jnp.concatenate([dih, ang], -1)        # [B, N, 12]


def _quaternions(R):
    diag = jnp.diagonal(R, axis1=-2, axis2=-1)
    Rxx, Ryy, Rzz = diag[..., 0], diag[..., 1], diag[..., 2]
    mags = 0.5 * jnp.sqrt(jnp.abs(1 + jnp.stack(
        [Rxx - Ryy - Rzz, -Rxx + Ryy - Rzz, -Rxx - Ryy + Rzz], -1)))
    signs = jnp.sign(jnp.stack([R[..., 2, 1] - R[..., 1, 2],
                                R[..., 0, 2] - R[..., 2, 0],
                                R[..., 1, 0] - R[..., 0, 1]], -1))
    xyz = signs * mags
    w = jnp.sqrt(jax.nn.relu(1 + Rxx + Ryy + Rzz))[..., None] / 2.0
    Q = jnp.concatenate([xyz, w], -1)
    return _normalize(Q, -1)


def _orientations_coarse_gl_tuple_uni_backen(X, E_idx, gt_frame):
    # TODO(synk): exact source of `_orientations_coarse_gl_tuple_uni_backen` is not
    # in the module; implemented PiFold-style using gt_frame rotations as local frames.
    B, N, K = E_idx.shape
    R = gt_frame.rot                               # [B,N,3,3] (columns = local basis)
    Q = jnp.swapaxes(R, -1, -2)                    # global -> local
    X_ca = X[:, :, 1, :]

    dX_inner = X[:, :, jnp.array([0, 2, 3]), :] - X_ca[:, :, None, :]
    dU_inner = jnp.einsum('bnij,bnaj->bnai', Q, dX_inner)
    V_direct = _normalize(dU_inner, -1).reshape(B, N, 9)

    nbrs = [gather_nodes(X[:, :, a, :], E_idx) for a in (1, 0, 2, 3)]   # Ca, N, C, O
    dX = jnp.stack(nbrs, axis=3) - X_ca[:, :, None, None, :]            # [B,N,K,4,3]
    dU = jnp.einsum('bnij,bnkaj->bnkai', Q, dX)
    E_direct = _normalize(dU, -1).reshape(B, N, K, 12)

    Q_neighbors = gather_nodes(Q.reshape(B, N, 9), E_idx).reshape(B, N, K, 3, 3)
    R_rel = jnp.einsum('bnij,bnkjl->bnkil', jnp.swapaxes(Q, -1, -2), Q_neighbors)
    E_angles = _quaternions(R_rel)                 # [B,N,K,4]
    return V_direct, E_direct, E_angles, Q_neighbors


# ----------------------------------------------------------------------------
# Featurizer forward (inference mode: div/drop/mask-edge augmentations disabled)
# ----------------------------------------------------------------------------

XYZ_MEAN = jnp.array([[-0.52663, 1.3599, -1.2915e-10],
                      [1.5254, -6.1342e-09, -2.8615e-10],
                      [2.1513, -0.14534, -0.013165]], jnp.float32)
XYZ_STD = jnp.array([[0.064174, 0.025685, 3.8159e-08],
                     [0.011167, 6.7004e-08, 3.5351e-08],
                     [0.0213, 0.81443, 0.66397]], jnp.float32)


def pifold_featurizer_forward(params, cfg, S, X, mask, gt_frame, atoms14, atoms14_mask,
                              atoms14_alt, atoms14_alt_mask, atoms14_ambiguous_mask):
    top_k = cfg['topk']
    num_rbf = cfg['num_rbf']
    virtual_num = cfg['virtual_num']
    B, N = X.shape[0], X.shape[1]

    mask = mask.astype(jnp.float32)
    mask_bool = mask.astype(bool)

    # eval mode: no noise augmentation
    X_nosie = X
    noise_frame = gt_frame
    X_ca = noise_frame._t

    # ---- neighbor graph: Pallas masked pairwise distance + top_k ----
    D_adjust = pallas_full_dist_adjust(X_ca, mask)
    k = min(top_k, D_adjust.shape[-1])
    neg_vals, E_idx = jax.lax.top_k(-D_adjust, k)
    D_neighbors = -neg_vals                                  # noqa: F841 (unused, as in torch)

    mask_attend = gather_nodes(mask[..., None], E_idx)[..., 0]
    mask_attend = (mask[..., None] * mask_attend) == 1       # bool [B,N,K]

    def node_mask_select(x):
        return x[mask_bool].reshape(-1, x.shape[-1])

    def edge_mask_select(x):
        return x[mask_attend].reshape(-1, x.shape[-1])

    mask_edge = None

    V_angles = node_mask_select(_dihedrals(X_nosie))

    # ---- atoms14 to local frames ----
    atoms14_l = gt_frame[:, :, None].invert_apply(atoms14).reshape(B, N, -1)
    atoms14_alt_l = gt_frame[:, :, None].invert_apply(atoms14_alt).reshape(B, N, -1)
    atoms14_mask_s = node_mask_select(atoms14_mask)
    atoms14_alt_mask_s = node_mask_select(atoms14_alt_mask)
    atoms14_ambiguous_mask_s = node_mask_select(atoms14_ambiguous_mask)
    atoms14_s = node_mask_select(atoms14_l).reshape(-1, 14, 3)
    atoms14_alt_s = node_mask_select(atoms14_alt_l).reshape(-1, 14, 3)

    V_direct, E_direct, E_angles, Q_neighbors = _orientations_coarse_gl_tuple_uni_backen(
        X_nosie, E_idx, noise_frame)
    V_direct = node_mask_select(V_direct)
    E_direct = edge_mask_select(E_direct)
    E_angles = edge_mask_select(E_angles)
    Q_neighbors = Q_neighbors[mask_attend]                   # [E,3,3]

    # ---- atoms & virtual atoms ----
    atom_N = X_nosie[:, :, 0, :]
    atom_Ca = X_nosie[:, :, 1, :]
    atom_C = X_nosie[:, :, 2, :]
    atom_O = X_nosie[:, :, 3, :]
    b_vec = atom_Ca - atom_N
    c_vec = atom_C - atom_Ca
    a_vec = jnp.cross(b_vec, c_vec)

    atoms = {'N': atom_N, 'Ca': atom_Ca, 'C': atom_C, 'O': atom_O}
    if virtual_num > 0:
        va = params['virtual_atoms']
        va = va / jnp.linalg.norm(va, axis=1, keepdims=True)
        for i in range(virtual_num):
            atoms['v%d' % i] = va[i, 0] * a_vec + va[i, 1] * b_vec + va[i, 2] * c_vec + atom_Ca

    atom_order = ['N', 'Ca', 'C', 'O'] + ['v%d' % i for i in range(virtual_num)]
    name_to_i = {n: i for i, n in enumerate(atom_order)}
    A_atoms = len(atom_order)
    atoms_stack = jnp.stack([atoms[n] for n in atom_order], axis=2)      # (B,N,A,3)

    # ---- node RBF distances (fused distance + RBF, single Pallas call) ----
    node_pairs = [('Ca', 'N'), ('Ca', 'C'), ('Ca', 'O'), ('N', 'C'), ('N', 'O'), ('O', 'C')]
    for i in range(virtual_num):
        for j in range(i):
            node_pairs.append(('v%d' % i, 'v%d' % j))
            node_pairs.append(('v%d' % j, 'v%d' % i))
    Pn = len(node_pairs)
    n_i1 = np.array([name_to_i[p[0]] for p in node_pairs])
    n_i2 = np.array([name_to_i[p[1]] for p in node_pairs])
    d_node = jnp.sqrt(jnp.sum((atoms_stack[:, :, n_i1, :] - atoms_stack[:, :, n_i2, :]) ** 2,
                              -1) + 1e-6)                                # (B,N,Pn)
    rbf_node = pallas_multi_rbf(d_node.reshape(B * N, Pn), num_rbf)      # (B*N, Pn*num_rbf)
    V_dist = node_mask_select(rbf_node.reshape(B, N, Pn * num_rbf))

    # ---- local xyz features ----
    X_local_noise = gt_frame[:, :, None].invert_apply(X_nosie)
    Calpha = X_local_noise[:, :, 1:2, :]
    X_feat = (X_local_noise[:, :, jnp.array([0, 2, 3]), :] - Calpha).reshape(B, N, 9)
    V_xyz = node_mask_select(X_feat).reshape(V_dist.shape[0], 3, 3)

    clamp_max = (XYZ_MEAN + 8 * XYZ_STD).reshape(1, 9)
    clamp_min = (XYZ_MEAN - 8 * XYZ_STD).reshape(1, 9)
    V_xyz_flat = jnp.clip(V_xyz.reshape(-1, 9), clamp_min, clamp_max)
    V_xyz = V_xyz_flat.reshape(V_xyz.shape)
    V_xyz = jnp.where(jnp.abs(V_xyz) > 3, XYZ_MEAN[None], V_xyz)
    ori_V_xyz = V_xyz

    V_xyz = jnp.concatenate([jnp.zeros((V_xyz.shape[0], 1, 3), jnp.float32), V_xyz], axis=1)
    gt_frame_selected = gt_frame[mask_bool]
    V_xyz = gt_frame_selected[:, None].apply(V_xyz)
    V_xyz_left = jnp.concatenate(
        [V_xyz[1:], jnp.tile(V_xyz[-1, 0][None, None, :], (1, 4, 1))], 0)
    V_xyz_right = jnp.concatenate(
        [jnp.tile(V_xyz[0, 0][None, None, :], (1, 4, 1)), V_xyz[:-1]], 0)
    V_xyz = jnp.concatenate([V_xyz, V_xyz_left, V_xyz_right], axis=1)
    V_xyz = gt_frame_selected[:, None].invert_apply(V_xyz)

    # ---- edge RBF distances: gather neighbor atoms once, fuse dist + RBF ----
    # TODO(synk): full scalar-prefetch fusion of E_idx into the Pallas kernel would
    # avoid even the small neighbor-coordinate gather; kept in eager JAX for robustness.
    pair_lst = ['Ca-Ca', 'Ca-C', 'C-Ca', 'Ca-N', 'N-Ca', 'Ca-O', 'O-Ca', 'C-C',
                'C-N', 'N-C', 'C-O', 'O-C', 'N-N', 'N-O', 'O-N', 'O-O']
    edge_pairs = [tuple(p.split('-')) for p in pair_lst]
    for i in range(virtual_num):
        edge_pairs.append(('v%d' % i, 'v%d' % i))
        for j in range(i):
            edge_pairs.append(('v%d' % i, 'v%d' % j))
            edge_pairs.append(('v%d' % j, 'v%d' % i))
    Pe = len(edge_pairs)
    e_i1 = np.array([name_to_i[p[0]] for p in edge_pairs])
    e_i2 = np.array([name_to_i[p[1]] for p in edge_pairs])
    atoms_nbr = gather_nodes(atoms_stack.reshape(B, N, A_atoms * 3),
                             E_idx).reshape(B, N, k, A_atoms, 3)
    d_edge = jnp.sqrt(jnp.sum((atoms_stack[:, :, None, e_i1, :]
                               - atoms_nbr[:, :, :, e_i2, :]) ** 2, -1) + 1e-6)  # (B,N,K,Pe)
    rbf_edge = pallas_multi_rbf(d_edge.reshape(B * N * k, Pe), num_rbf)  # (B*N*K, Pe*num_rbf)
    E_dist = edge_mask_select(rbf_edge.reshape(B, N, k, Pe * num_rbf))

    _V = jnp.concatenate([V_dist, V_angles, V_direct], -1)
    _E = jnp.concatenate([E_dist, E_angles, E_direct], -1)

    # ---- index bookkeeping ----
    src = E_idx[mask_attend].reshape(1, -1)
    dst = jnp.broadcast_to(jnp.arange(N, dtype=jnp.int32).reshape(1, -1, 1),
                           mask_attend.shape)[mask_attend].reshape(1, -1)
    E_idx_w_gap = jnp.concatenate([dst, src], 0).astype(jnp.int32)   # (int32; torch uses int64)

    mask_index = jnp.cumsum(mask, axis=1) - 1
    mask_src_index = jnp.broadcast_to(mask_index[:, None, :], (B, N, N))
    mask_dst_index = jnp.broadcast_to(mask_index[:, :, None], (B, N, k))
    E_idx2 = jnp.take_along_axis(mask_src_index, E_idx, axis=-1)
    shift = jnp.cumsum(jnp.sum(mask, 1), 0) - jnp.sum(mask, 1)
    src2 = (shift.reshape(B, 1, 1) + E_idx2)[mask_attend].reshape(1, -1)
    dst2 = (shift.reshape(B, 1, 1) + mask_dst_index)[mask_attend].reshape(1, -1)
    E_idx_out = jnp.concatenate([dst2, src2], 0).astype(jnp.int32)

    sparse_idx = jnp.stack(jnp.nonzero(mask), -1)
    batch_id = sparse_idx[:, 0]
    V_xyz_out = (V_xyz, ori_V_xyz)

    return (_V, _E, E_idx_out, batch_id, mask_edge, E_idx_w_gap, Q_neighbors, V_xyz_out,
            atoms14_s, atoms14_mask_s, atoms14_alt_s, atoms14_alt_mask_s,
            atoms14_ambiguous_mask_s)


# ----------------------------------------------------------------------------
# main
# ----------------------------------------------------------------------------

if __name__ == "__main__":
    cfg = dict(topk=4, virtual_num=3, num_rbf=16,
               node_dist=True, node_angle=True, node_direct=True,
               edge_dist=True, edge_angle=True, edge_direct=True,
               fix_bug=False, div=0.0, num_drop_edge=0, num_mask_edge=0, shuffle_aug=False)

    B, N = 2, 8
    key = jax.random.PRNGKey(0)
    keys = jax.random.split(key, 8)

    # deterministic parameter init (module __init__: torch.rand(virtual_num, 3))
    params = {'virtual_atoms': jax.random.uniform(keys[0], (cfg['virtual_num'], 3),
                                                  dtype=jnp.float32)}

    X = jax.random.normal(keys[1], (B, N, 4, 3), dtype=jnp.float32) * 2.0
    mask = jnp.ones((B, N), jnp.float32).at[1, -1].set(0.0)
    S = jnp.zeros((B, N), jnp.int32)
    gt_frame = make_frames(X)

    atoms14 = jax.random.normal(keys[2], (B, N, 14, 3), dtype=jnp.float32)
    atoms14_mask = (jax.random.uniform(keys[3], (B, N, 14)) > 0.3).astype(jnp.float32)
    atoms14_alt = jax.random.normal(keys[4], (B, N, 14, 3), dtype=jnp.float32)
    atoms14_alt_mask = (jax.random.uniform(keys[5], (B, N, 14)) > 0.3).astype(jnp.float32)
    atoms14_ambiguous_mask = (jax.random.uniform(keys[6], (B, N, 14)) > 0.8).astype(jnp.float32)

    out = pifold_featurizer_forward(params, cfg, S, X, mask, gt_frame, atoms14,
                                    atoms14_mask, atoms14_alt, atoms14_alt_mask,
                                    atoms14_ambiguous_mask)
    _V, _E = out[0], out[1]
    jax.block_until_ready(_V)
    jax.block_until_ready(_E)
    assert _V.shape[-1] == 12 * cfg['num_rbf'] + 12 + 9
    assert _E.shape[-1] == 25 * cfg['num_rbf'] + 4 + 12
    assert jnp.all(jnp.isfinite(_V)) and jnp.all(jnp.isfinite(_E))
    print("KERNEL_OK")
</pallas_src>

<mosaic_0001>
module attributes {stable_mosaic.version = 11 : i64} {
  func.func @_full_dist_kernel(%arg0: i32, %arg1: i32, %arg2: memref<1x8x3xf32, #tpu.memory_space<vmem>>, %arg3: memref<1x3x8xf32, #tpu.memory_space<vmem>>, %arg4: memref<1x8x1xf32, #tpu.memory_space<vmem>>, %arg5: memref<1x1x8xf32, #tpu.memory_space<vmem>>, %arg6: memref<1x8x8xf32, #tpu.memory_space<vmem>>) attributes {dimension_semantics = [#tpu.dimension_semantics<parallel>, #tpu.dimension_semantics<parallel>], iteration_bounds = array<i64: 2, 1>, scalar_prefetch = 0 : i64, scratch_operands = 0 : i64, tpu.core_type = #tpu.core_type<tc>, window_params = [{transform_indices = @transform_0, window_bounds = array<i64: 1, 8, 3>}, {transform_indices = @transform_1, window_bounds = array<i64: 1, 3, 8>}, {transform_indices = @transform_2, window_bounds = array<i64: 1, 8, 1>}, {transform_indices = @transform_3, window_bounds = array<i64: 1, 1, 8>}, {transform_indices = @transform_4, window_bounds = array<i64: 1, 8, 8>}]} {
    %c0 = arith.constant 0 : index
    %c0_0 = arith.constant 0 : index
    %c0_1 = arith.constant 0 : index
    %0 = vector.load %arg2[%c0, %c0_0, %c0_1] : memref<1x8x3xf32, #tpu.memory_space<vmem>>, vector<1x8x3xf32>
    %1 = vector.shape_cast %0 : vector<1x8x3xf32> to vector<8x3xf32>
    %c0_2 = arith.constant 0 : index
    %c0_3 = arith.constant 0 : index
    %c0_4 = arith.constant 0 : index
    %2 = vector.load %arg3[%c0_2, %c0_3, %c0_4] : memref<1x3x8xf32, #tpu.memory_space<vmem>>, vector<1x3x8xf32>
    %3 = vector.shape_cast %2 : vector<1x3x8xf32> to vector<3x8xf32>
    %4 = arith.mulf %1, %1 : vector<8x3xf32>
    %cst = arith.constant dense<0.000000e+00> : vector<8xf32>
    %5 = vector.multi_reduction <add>, %4, %cst [1] : vector<8x3xf32> to vector<8xf32>
    %6 = vector.shape_cast %5 : vector<8xf32> to vector<8x1xf32>
    %7 = arith.mulf %3, %3 : vector<3x8xf32>
    %cst_5 = arith.constant dense<0.000000e+00> : vector<8xf32>
    %8 = vector.multi_reduction <add>, %7, %cst_5 [0] : vector<3x8xf32> to vector<8xf32>
    %9 = vector.shape_cast %8 : vector<8xf32> to vector<1x8xf32>
    %cst_6 = arith.constant dense<0.000000e+00> : vector<8x8xf32>
    %10 = tpu.matmul %1, %3, %cst_6 {dimension_numbers = #tpu.dot_dimension_numbers<[1], [0], [0], [1], [0, 0, 1, 1], [], []>} : vector<8x3xf32>, vector<3x8xf32>, vector<8x8xf32> -> vector<8x8xf32>
    %11 = vector.broadcast %6 : vector<8x1xf32> to vector<8x8xf32>
    %12 = vector.broadcast %9 : vector<1x8xf32> to vector<8x8xf32>
    %13 = arith.addf %11, %12 : vector<8x8xf32>
    %cst_7 = arith.constant 2.000000e+00 : f32
    %14 = vector.broadcast %cst_7 : f32 to vector<8x8xf32>
    %15 = arith.mulf %14, %10 : vector<8x8xf32>
    %16 = arith.subf %13, %15 : vector<8x8xf32>
    %cst_8 = arith.constant 0.000000e+00 : f32
    %17 = vector.broadcast %cst_8 : f32 to vector<8x8xf32>
    %18 = arith.maximumf %16, %17 : vector<8x8xf32>
    %c0_9 = arith.constant 0 : index
    %c0_10 = arith.constant 0 : index
    %c0_11 = arith.constant 0 : index
    %19 = vector.load %arg4[%c0_9, %c0_10, %c0_11] : memref<1x8x1xf32, #tpu.memory_space<vmem>>, vector<1x8x1xf32>
    %20 = vector.shape_cast %19 : vector<1x8x1xf32> to vector<8x1xf32>
    %c0_12 = arith.constant 0 : index
    %c0_13 = arith.constant 0 : index
    %c0_14 = arith.constant 0 : index
    %21 = vector.load %arg5[%c0_12, %c0_13, %c0_14] : memref<1x1x8xf32, #tpu.memory_space<vmem>>, vector<1x1x8xf32>
    %22 = vector.shape_cast %21 : vector<1x1x8xf32> to vector<1x8xf32>
    %23 = vector.broadcast %20 : vector<8x1xf32> to vector<8x8xf32>
    %24 = vector.broadcast %22 : vector<1x8xf32> to vector<8x8xf32>
    %25 = arith.mulf %23, %24 : vector<8x8xf32>
    %cst_15 = arith.constant 1.000000e+00 : f32
    %26 = vector.broadcast %cst_15 : f32 to vector<8x8xf32>
    %27 = arith.subf %26, %25 : vector<8x8xf32>
    %cst_16 = arith.constant 1.000000e+04 : f32
    %28 = vector.broadcast %cst_16 : f32 to vector<8x8xf32>
    %29 = arith.mulf %27, %28 : vector<8x8xf32>
    %cst_17 = arith.constant 9.99999997E-7 : f32
    %30 = vector.broadcast %cst_17 : f32 to vector<8x8xf32>
    %31 = arith.addf %18, %30 : vector<8x8xf32>
    %32 = math.sqrt %31 : vector<8x8xf32>
    %33 = arith.mulf %25, %32 : vector<8x8xf32>
    %34 = arith.addf %29, %33 : vector<8x8xf32>
    %cst_18 = arith.constant dense<0xFF800000> : vector<8xf32>
    %35 = vector.multi_reduction <maximumf>, %34, %cst_18 [1] : vector<8x8xf32> to vector<8xf32>
    %36 = vector.shape_cast %35 : vector<8xf32> to vector<8x1xf32>
    %cst_19 = arith.constant 1.000000e+00 : f32
    %37 = vector.broadcast %cst_19 : f32 to vector<8x8xf32>
    %38 = arith.subf %37, %25 : vector<8x8xf32>
    %cst_20 = arith.constant 1.000000e+00 : f32
    %39 = vector.broadcast %cst_20 : f32 to vector<8x1xf32>
    %40 = arith.addf %36, %39 : vector<8x1xf32>
    %41 = vector.broadcast %40 : vector<8x1xf32> to vector<8x8xf32>
    %42 = arith.mulf %38, %41 : vector<8x8xf32>
    %43 = arith.addf %34, %42 : vector<8x8xf32>
    %c0_21 = arith.constant 0 : index
    %c0_22 = arith.constant 0 : index
    %c0_23 = arith.constant 0 : index
    %44 = vector.load %arg6[%c0_21, %c0_22, %c0_23] : memref<1x8x8xf32, #tpu.memory_space<vmem>>, vector<1x8x8xf32>
    %45 = vector.shape_cast %44 : vector<1x8x8xf32> to vector<8x8xf32>
    %46 = vector.shape_cast %43 : vector<8x8xf32> to vector<1x8x8xf32>
    tpu.vector_store %arg6[%c0_21, %c0_22, %c0_23], %46 {strides = array<i32>} : memref<1x8x8xf32, #tpu.memory_space<vmem>>, vector<1x8x8xf32>,
    return
  }
  func.func @transform_0(%arg0: i32, %arg1: i32) -> (i32, i32, i32) {
    %c0_i32 = arith.constant 0 : i32
    %c0_i32_0 = arith.constant 0 : i32
    return %arg0, %arg1, %c0_i32 : i32, i32, i32
  }
  func.func @transform_1(%arg0: i32, %arg1: i32) -> (i32, i32, i32) {
    %c0_i32 = arith.constant 0 : i32
    %c0_i32_0 = arith.constant 0 : i32
    %c0_i32_1 = arith.constant 0 : i32
    return %arg0, %c0_i32, %c0_i32_0 : i32, i32, i32
  }
  func.func @transform_2(%arg0: i32, %arg1: i32) -> (i32, i32, i32) {
    %c0_i32 = arith.constant 0 : i32
    %c0_i32_0 = arith.constant 0 : i32
    return %arg0, %arg1, %c0_i32 : i32, i32, i32
  }
  func.func @transform_3(%arg0: i32, %arg1: i32) -> (i32, i32, i32) {
    %c0_i32 = arith.constant 0 : i32
    %c0_i32_0 = arith.constant 0 : i32
    %c0_i32_1 = arith.constant 0 : i32
    return %arg0, %c0_i32, %c0_i32_0 : i32, i32, i32
  }
  func.func @transform_4(%arg0: i32, %arg1: i32) -> (i32, i32, i32) {
    %c0_i32 = arith.constant 0 : i32
    %c0_i32_0 = arith.constant 0 : i32
    return %arg0, %arg1, %c0_i32 : i32, i32, i32
  }
}

</mosaic_0001>

<llo_original>
// kernel: tpu_custom_call.1
$region0: #{tpu_custom_call.1}
  #allocation0 [shape = 'u32[]', space=smem, size = 0x4, offset = 0x4, fixed_abs, tag = 'smem constant byte address 0x4 - core index']
  #allocation1 [shape = 'u32[144,128]{1,0:T(1,128)}', space=vmem, size = 0x12000, scoped, tag = 'internal scratch']
  %s0 = inlined_call_operand.vmem [shape: f32[2,8,3], index: 0, kind: input, shape index: {}]
  %s1 = inlined_call_operand.vmem [shape: f32[2,3,8], index: 1, kind: input, shape index: {}]
  %s2 = inlined_call_operand.vmem [shape: f32[2,8,1], index: 2, kind: input, shape index: {}]
  %s3 = inlined_call_operand.vmem [shape: f32[2,1,8], index: 3, kind: input, shape index: {}]
  %s4 = inlined_call_operand.hbm [shape: f32[2,8,8], index: 4, kind: output, shape index: {}]
  %s5 = sld [smem:[#allocation0]]
  $region49: #{tpu_custom_call.1} parent=0
    _
  %s7 = ssub.s32 1, %s5
  %s8 = scalar_select 0, %s7, %s5
  $region1: #{tpu_custom_call.1} parent=0
    #allocation2 [shape = 'u8[8192]{0}', space=vmem, size = 0x2000, scoped, tag = 'output window, operand 0']
    #allocation3 [shape = 's32[2]{0}', space=sflag, size = 0x8, scoped, tag = 'scoped memory for tpu_custom_call.1']
    %9 = vsyncpa [#allocation3], 0
    %s10 = scalar_lea.sflag [#allocation3], 1
    %11 = vsyncpa %s10, 0
    loop: start=0, step=1, limit=4
    $region2: #{tpu_custom_call.1} parent=1 // loop_pre_header
      _
    $region3: #{tpu_custom_call.1} parent=1 // loop_header
      %s13 = sphi 0, %s17
      %p14 = scmp.ge.s32.totalorder %s13, 4
      %s20 = sphi 0, %s32
      %s21 = sphi 0, %s28
      %s22 = sphi 0, %s20
      %s23 = sphi 0, %s21
      %s24 = sphi 0, %s22
      %s25 = sphi 0, %s23
      %s37 = sphi 0, %s39
      %s40 = sphi 0, %s37
      %s41 = sphi 0, %s40
      %s57 = sphi 0, %s41
      %s63 = sphi 0, %s65
      %s66 = sphi 0, %s63
      %s67 = sphi 0, %s66
      %s83 = sphi 0, %s67
      %s91 = sphi 0, %s93
      %s94 = sphi 0, %s91
      %s95 = sphi 0, %s94
      %s111 = sphi 0, %s95
      %s117 = sphi 0, %s119
      %s120 = sphi 0, %s117
      %s121 = sphi 0, %s120
      %s137 = sphi 0, %s121
      %s145 = sphi 0, %s147
      %s148 = sphi 0, %s145
      %s149 = sphi 0, %s148
      %s165 = sphi 0, %s149
    $region4: #{tpu_custom_call.1} parent=1 // loop_header_branch
      %16 = sbr.rel (%p14) target = $region8
    $region5: #{tpu_custom_call.1} parent=1 // loop_body
      %s18 = ssub.s32 %s13, 1
      %s19 = ssub.s32 %s13, 2
      %s26 = sadd.s32 1, %s21
      %p27 = scmp.ge.s32.totalorder %s26, 1
      %s28 = scalar_select %p27, 0, %s26
      %s29 = sadd.s32 1, %s20
      %s30 = scalar_select %p27, %s29, %s20
      %p31 = scmp.ge.s32.totalorder %s30, 2
      %s32 = scalar_select %p31, 0, %s30
      %s33 = ssub.s32 %s20, %s32
      %s34 = ssub.s32 %s21, %s28
      %s35 = sor.u32 %s33, %s34
      %p36 = scmp.eq.s32.totalorder %s35, 0
      %s38 = sadd.s32 %s37, 1
      %s39 = scalar_select %p36, %s37, %s38
      %p42 = pneg %p36
      %p43 = scmp.eq.s32.totalorder %s13, 1
      %p44 = por %p42, %p43
      %p45 = scmp.ne.s32.totalorder %s37, %s40
      %p46 = scmp.eq.s32.totalorder %s13, 0
      %p47 = por %p45, %p46
      %p48 = scmp.ne.s32.totalorder %s37, %s40
      %p49 = scmp.eq.s32.totalorder %s18, 1
      %p50 = por %p48, %p49
      %p51 = scmp.ne.s32.totalorder %s40, %s41
      %p52 = scmp.eq.s32.totalorder %s18, 0
      %p53 = por %p51, %p52
      %p54 = scmp.ne.s32.totalorder %s40, %s41
      %p55 = scmp.eq.s32.totalorder %s19, 1
      %p56 = por %p54, %p55
      %p58 = scmp.ne.s32.totalorder %s41, %s57
      %p59 = scmp.eq.s32.totalorder %s19, 0
      %p60 = por %p58, %p59
      %s61 = ssub.s32 %s20, %s32
      %p62 = scmp.eq.s32.totalorder %s61, 0
      %s64 = sadd.s32 %s63, 1
      %s65 = scalar_select %p62, %s63, %s64
      %p68 = pneg %p62
      %p69 = scmp.eq.s32.totalorder %s13, 1
      %p70 = por %p68, %p69
      %p71 = scmp.ne.s32.totalorder %s63, %s66
      %p72 = scmp.eq.s32.totalorder %s13, 0
      %p73 = por %p71, %p72
      %p74 = scmp.ne.s32.totalorder %s63, %s66
      %p75 = scmp.eq.s32.totalorder %s18, 1
      %p76 = por %p74, %p75
      %p77 = scmp.ne.s32.totalorder %s66, %s67
      %p78 = scmp.eq.s32.totalorder %s18, 0
      %p79 = por %p77, %p78
      %p80 = scmp.ne.s32.totalorder %s66, %s67
      %p81 = scmp.eq.s32.totalorder %s19, 1
      %p82 = por %p80, %p81
      %p84 = scmp.ne.s32.totalorder %s67, %s83
      %p85 = scmp.eq.s32.totalorder %s19, 0
      %p86 = por %p84, %p85
      %s87 = ssub.s32 %s20, %s32
      %s88 = ssub.s32 %s21, %s28
      %s89 = sor.u32 %s87, %s88
      %p90 = scmp.eq.s32.totalorder %s89, 0
      %s92 = sadd.s32 %s91, 1
      %s93 = scalar_select %p90, %s91, %s92
      %p96 = pneg %p90
      %p97 = scmp.eq.s32.totalorder %s13, 1
      %p98 = por %p96, %p97
      %p99 = scmp.ne.s32.totalorder %s91, %s94
      %p100 = scmp.eq.s32.totalorder %s13, 0
      %p101 = por %p99, %p100
      %p102 = scmp.ne.s32.totalorder %s91, %s94
      %p103 = scmp.eq.s32.totalorder %s18, 1
      %p104 = por %p102, %p103
      %p105 = scmp.ne.s32.totalorder %s94, %s95
      %p106 = scmp.eq.s32.totalorder %s18, 0
      %p107 = por %p105, %p106
      %p108 = scmp.ne.s32.totalorder %s94, %s95
      %p109 = scmp.eq.s32.totalorder %s19, 1
      %p110 = por %p108, %p109
      %p112 = scmp.ne.s32.totalorder %s95, %s111
      %p113 = scmp.eq.s32.totalorder %s19, 0
      %p114 = por %p112, %p113
      %s115 = ssub.s32 %s20, %s32
      %p116 = scmp.eq.s32.totalorder %s115, 0
      %s118 = sadd.s32 %s117, 1
      %s119 = scalar_select %p116, %s117, %s118
      %p122 = pneg %p116
      %p123 = scmp.eq.s32.totalorder %s13, 1
      %p124 = por %p122, %p123
      %p125 = scmp.ne.s32.totalorder %s117, %s120
      %p126 = scmp.eq.s32.totalorder %s13, 0
      %p127 = por %p125, %p126
      %p128 = scmp.ne.s32.totalorder %s117, %s120
      %p129 = scmp.eq.s32.totalorder %s18, 1
      %p130 = por %p128, %p129
      %p131 = scmp.ne.s32.totalorder %s120, %s121
      %p132 = scmp.eq.s32.totalorder %s18, 0
      %p133 = por %p131, %p132
      %p134 = scmp.ne.s32.totalorder %s120, %s121
      %p135 = scmp.eq.s32.totalorder %s19, 1
      %p136 = por %p134, %p135
      %p138 = scmp.ne.s32.totalorder %s121, %s137
      %p139 = scmp.eq.s32.totalorder %s19, 0
      %p140 = por %p138, %p139
      %s141 = ssub.s32 %s20, %s32
      %s142 = ssub.s32 %s21, %s28
      %s143 = sor.u32 %s141, %s142
      %p144 = scmp.eq.s32.totalorder %s143, 0
      %s146 = sadd.s32 %s145, 1
      %s147 = scalar_select %p144, %s145, %s146
      %p150 = pneg %p144
      %p151 = scmp.eq.s32.totalorder %s13, 1
      %p152 = por %p150, %p151
      %p153 = scmp.ne.s32.totalorder %s145, %s148
      %p154 = scmp.eq.s32.totalorder %s13, 0
      %p155 = por %p153, %p154
      %p156 = scmp.ne.s32.totalorder %s145, %s148
      %p157 = scmp.eq.s32.totalorder %s18, 1
      %p158 = por %p156, %p157
      %p159 = scmp.ne.s32.totalorder %s148, %s149
      %p160 = scmp.eq.s32.totalorder %s18, 0
      %p161 = por %p159, %p160
      %p162 = scmp.ne.s32.totalorder %s148, %s149
      %p163 = scmp.eq.s32.totalorder %s19, 1
      %p164 = por %p162, %p163
      %p166 = scmp.ne.s32.totalorder %s149, %s165
      %p167 = scmp.eq.s32.totalorder %s19, 0
      %p168 = por %p166, %p167
      %p169 = scmp.le.s32.totalorder 1, %s13
      %p170 = scmp.lt.s32.totalorder %s13, 3
      %p171 = pnand %p169, %p170
      %p172 = pneg %p171
      // Predicated region
      $region9: #{tpu_custom_call.1} parent=5 // pred_check
        _
      $region10: #{tpu_custom_call.1} parent=5 // pred_check_branch
        %174 = sbr.rel (%p171) target = $region12
      $region11: #{tpu_custom_call.1} parent=5 // pred_region
        %s175 = ssub.s32 %s13, 1
      $region12: #{tpu_custom_call.1} parent=5 // pred_fallthru
        _
      %p176 = scmp.lt.s32.totalorder %s13, 2
      // Predicated region
      $region13: #{tpu_custom_call.1} parent=5 // pred_check
        %p177 = pneg %p176
      $region14: #{tpu_custom_call.1} parent=5 // pred_check_branch
        %179 = sbr.rel (%p177) target = $region16
      $region15: #{tpu_custom_call.1} parent=5 // pred_region
        // Predicated region
        $region17: #{tpu_custom_call.1} parent=15 // pred_check
          %p180 = pneg %p47
        $region18: #{tpu_custom_call.1} parent=15 // pred_check_branch
          %182 = sbr.rel (%p180) target = $region20
        $region19: #{tpu_custom_call.1} parent=15 // pred_region
          %p183 = scmp.lt.s32.totalorder %s20, 1
          %s184 = scalar_select %p183, %s20, 1
          %p185 = scmp.lt.s32.totalorder %s21, 0
          %s186 = scalar_select %p185, %s21, 0
          %s187 = sadd.s32 %s186, %s184
          %s188 = smul.addr %s187, 8
          %s189 = scalar_lea.vmem %s0, %s188
        $region20: #{tpu_custom_call.1} parent=15 // pred_fallthru
          _
        // Predicated region
        $region21: #{tpu_custom_call.1} parent=15 // pred_check
          %p190 = pneg %p73
        $region22: #{tpu_custom_call.1} parent=15 // pred_check_branch
          %192 = sbr.rel (%p190) target = $region24
        $region23: #{tpu_custom_call.1} parent=15 // pred_region
          %p193 = scmp.lt.s32.totalorder %s20, 1
          %s194 = scalar_select %p193, %s20, 1
          %s195 = smul.addr %s194, 4
          %s196 = scalar_lea.vmem %s1, %s195
        $region24: #{tpu_custom_call.1} parent=15 // pred_fallthru
          _
        // Predicated region
        $region25: #{tpu_custom_call.1} parent=15 // pred_check
          %p197 = pneg %p101
        $region26: #{tpu_custom_call.1} parent=15 // pred_check_branch
          %199 = sbr.rel (%p197) target = $region28
        $region27: #{tpu_custom_call.1} parent=15 // pred_region
          %p200 = scmp.lt.s32.totalorder %s20, 1
          %s201 = scalar_select %p200, %s20, 1
          %p202 = scmp.lt.s32.totalorder %s21, 0
          %s203 = scalar_select %p202, %s21, 0
          %s204 = sadd.s32 %s203, %s201
          %s205 = smul.addr %s204, 8
          %s206 = scalar_lea.vmem %s2, %s205
        $region28: #{tpu_custom_call.1} parent=15 // pred_fallthru
          _
        // Predicated region
        $region29: #{tpu_custom_call.1} parent=15 // pred_check
          %p207 = pneg %p127
        $region30: #{tpu_custom_call.1} parent=15 // pred_check_branch
          %209 = sbr.rel (%p207) target = $region32
        $region31: #{tpu_custom_call.1} parent=15 // pred_region
          %p210 = scmp.lt.s32.totalorder %s20, 1
          %s211 = scalar_select %p210, %s20, 1
          %s212 = scalar_lea.vmem %s3, %s211
        $region32: #{tpu_custom_call.1} parent=15 // pred_fallthru
          _
      $region16: #{tpu_custom_call.1} parent=5 // pred_fallthru
        _
      %p213 = scmp.le.s32.totalorder 1, %s13
      %p214 = scmp.lt.s32.totalorder %s13, 3
      %p215 = pnand %p213, %p214
      %p216 = pneg %p215
      // Predicated region
      $region33: #{tpu_custom_call.1} parent=5 // pred_check
        _
      $region34: #{tpu_custom_call.1} parent=5 // pred_check_branch
        %218 = sbr.rel (%p215) target = $region36
      $region35: #{tpu_custom_call.1} parent=5 // pred_region
        %s219 = ssub.s32 %s13, 1
        %p220 = scmp.lt.s32.totalorder %s22, 1
        %s221 = scalar_select %p220, %s22, 1
        %p222 = scmp.lt.s32.totalorder %s23, 0
        %s223 = scalar_select %p222, %s23, 0
        %s224 = sadd.s32 %s223, %s221
        %s225 = smul.addr %s224, 8
        %s226 = scalar_lea.vmem %s0, %s225
        %p227 = pneg %p53
        %p228 = pneg %p50
        %p229 = scmp.lt.s32.totalorder %s22, 1
        %s230 = scalar_select %p229, %s22, 1
        %s231 = smul.addr %s230, 4
        %s232 = scalar_lea.vmem %s1, %s231
        %p233 = pneg %p79
        %p234 = pneg %p76
        %p235 = scmp.lt.s32.totalorder %s22, 1
        %s236 = scalar_select %p235, %s22, 1
        %p237 = scmp.lt.s32.totalorder %s23, 0
        %s238 = scalar_select %p237, %s23, 0
        %s239 = sadd.s32 %s238, %s236
        %s240 = smul.addr %s239, 8
        %s241 = scalar_lea.vmem %s2, %s240
        %p242 = pneg %p107
        %p243 = pneg %p104
        %p244 = scmp.lt.s32.totalorder %s22, 1
        %s245 = scalar_select %p244, %s22, 1
        %s246 = scalar_lea.vmem %s3, %s245
        %p247 = pneg %p133
        %p248 = pneg %p130
        %p249 = pneg %p161
        %p250 = pneg %p158
        %s251 = sand.u32 %s148, 1
        %s252 = scalar_lea.sflag [#allocation3], %s251
        %s253 = sand.u32 %s148, 1
        %s254 = smul.addr %s253, 8
        %s255 = scalar_lea.vmem [#allocation2], %s254
        %p256 = scmp.lt.s32.totalorder %s22, 1
        %s257 = scalar_select %p256, %s22, 1
        %p258 = scmp.lt.s32.totalorder %s23, 0
        %s259 = scalar_select %p258, %s23, 0
        %s260 = sadd.s32 %s259, %s257
        %s261 = smul.addr %s260, 8
        %s262 = scalar_lea.vmem %s0, %s261
        %p263 = scmp.lt.s32.totalorder %s22, 1
        %s264 = scalar_select %p263, %s22, 1
        %s265 = smul.addr %s264, 4
        %s266 = scalar_lea.vmem %s1, %s265
        %p267 = scmp.lt.s32.totalorder %s22, 1
        %s268 = scalar_select %p267, %s22, 1
        %p269 = scmp.lt.s32.totalorder %s23, 0
        %s270 = scalar_select %p269, %s23, 0
        %s271 = sadd.s32 %s270, %s268
        %s272 = smul.addr %s271, 8
        %s273 = scalar_lea.vmem %s2, %s272
        %p274 = scmp.lt.s32.totalorder %s22, 1
        %s275 = scalar_select %p274, %s22, 1
        %s276 = scalar_lea.vmem %s3, %s275
        %v277 = vld [vmem:[%s262] sm:$0xff]
        %v278 = vld [vmem:[%s266] sm:$0x7]
        %v279 = vmul.f32 %v277, %v277
        %vm280 = vcmask 23552
        %v281 = vsel %vm280, %v279, 0.0
        %282 = vadd.xlane.f32.xlu0 %v281
        %v283 = vpop.xlane.xlu0 %282
        %v284 = vmul.f32 %v278, %v278
        %vm285 = vcmask 59392
        %v286 = vsel %vm285, %v284, 0.0
        %v287 = vrot.slane %v286, 4
        %v288 = vadd.f32 %v286, %v287
        %v289 = vrot.slane %v288, 2
        %v290 = vadd.f32 %v288, %v289
        %v291 = vrot.slane %v290, 1
        %v292 = vadd.f32 %v290, %v291
        %v294 = vsel %vm280, %v277, 0
        %vm296 = vcmask 1042432
        %v298 = vsel %vm296, %v278, 0
        %300 = vmatprep.subr.mxu0 0.0
        %301 = vmatpush1.msra.mxu0 %v298
        %302 = vmatprep.subr.mxu0 0.0
        %303 = vmatpush1.msra.mxu0 0.0
        %304 = vmatprep.subr.mxu0 0.0
        %305 = vmatpush1.msra.mxu0 0.0
        %306 = vmatprep.subr.mxu0 0.0
        %307 = vmatpush1.msra.mxu0 0.0
        %308 = vmatprep.subr.mxu0 0.0
        %309 = vmatpush1.msra.mxu0 0.0
        %310 = vmatprep.subr.mxu0 0.0
        %311 = vmatpush1.msra.mxu0 0.0
        %312 = vmatprep.subr.mxu0 0.0
        %313 = vmatpush1.msra.mxu0 0.0
        %314 = vmatprep.subr.mxu0 0.0
        %315 = vmatpush1.msra.mxu0 0.0
        %316 = vmatprep.subr.mxu0 0.0
        %317 = vmatpush1.msra.mxu0 0.0
        %318 = vmatprep.subr.mxu0 0.0
        %319 = vmatpush1.msra.mxu0 0.0
        %320 = vmatprep.subr.mxu0 0.0
        %321 = vmatpush1.msra.mxu0 0.0
        %322 = vmatprep.subr.mxu0 0.0
        %323 = vmatpush1.msra.mxu0 0.0
        %324 = vmatprep.subr.mxu0 0.0
        %325 = vmatpush1.msra.mxu0 0.0
        %326 = vmatprep.subr.mxu0 0.0
        %327 = vmatpush1.msra.mxu0 0.0
        %328 = vmatprep.subr.mxu0 0.0
        %329 = vmatpush1.msra.mxu0 0.0
        %330 = vmatprep.subr.mxu0 0.0
        %331 = vmatpush1.msra.mxu0 0.0
        %332 = vmatprep.subr.mxu0 0.0
        %333 = vmatpush1.msra.mxu0 0.0
        %334 = vmatprep.subr.mxu0 0.0
        %335 = vmatpush1.msra.mxu0 0.0
        %336 = vmatprep.subr.mxu0 0.0
        %337 = vmatpush1.msra.mxu0 0.0
        %338 = vmatprep.subr.mxu0 0.0
        %339 = vmatpush1.msra.mxu0 0.0
        %340 = vmatprep.subr.mxu0 0.0
        %341 = vmatpush1.msra.mxu0 0.0
        %342 = vmatprep.subr.mxu0 0.0
        %343 = vmatpush1.msra.mxu0 0.0
        %344 = vmatprep.subr.mxu0 0.0
        %345 = vmatpush1.msra.mxu0 0.0
        %346 = vmatprep.subr.mxu0 0.0
        %347 = vmatpush1.msra.mxu0 0.0
        %348 = vmatprep.subr.mxu0 0.0
        %349 = vmatpush1.msra.mxu0 0.0
        %350 = vmatprep.subr.mxu0 0.0
        %351 = vmatpush1.msra.mxu0 0.0
        %352 = vmatprep.subr.mxu0 0.0
        %353 = vmatpush1.msra.mxu0 0.0
        %354 = vmatprep.subr.mxu0 0.0
        %355 = vmatpush1.msra.mxu0 0.0
        %356 = vmatprep.subr.mxu0 0.0
        %357 = vmatpush1.msra.mxu0 0.0
        %358 = vmatprep.subr.mxu0 0.0
        %359 = vmatpush1.msra.mxu0 0.0
        %360 = vmatprep.subr.mxu0 0.0
        %361 = vmatpush1.msra.mxu0 0.0
        %362 = vmatprep.subr.mxu0 0.0
        %363 = vmatpush1.msra.mxu0 0.0
        %364 = vmatprep.mubr.f32.mxu0 0.0
        %365 = vmatmul.mubr.f32.gmra.mrb[0].mxu0 %v294
        %v366 = vpop.f32.mrb[0].mxu0
        %v367 = vadd.f32 0.0, %v366
        %v368 = vpop.f32.mrb[0].mxu0
        %369 = vdwg.mxu0
        %v370 = vadd.f32 %v283, %v292
        %v371 = vmul.f32 %v367, 2.0
        %v372 = vsub.f32 %v370, %v371
        %v373 = vmax.f32 %v372, 0.0
        %v374 = vld [vmem:[%s273] sm:$0xff]
        %v375 = vld [vmem:[%s276] sm:$0x1]
        %377 = vset.pattern.permute.xlu0 0
        %378 = vperm.xlu0 %377, %v374
        %v379 = vpop.permute.xlu0 %378
        %v382 = vlaneseq
        %v383 = vshrl.u32 %v382, 7
        %v384 = vsub.s32 0, %v383
        %v385 = vrot.slane %v375, %v384
        %v387 = vmul.f32 %v379, %v385
        %v388 = vsub.f32 1.0, %v387
        %v389 = vmul.f32 %v388, 10000.0
        %v390 = vadd.f32 %v373, 1e-06
        %v391 = vrsqrt.pop %v390
        %v392 = vmul.f32 %v390, %v391
        %vm393 = vcmp.eq.f32.partialorder %v390, inf
        %v394 = vsel %vm393, %v390, %v392
        %vm395 = vcmp.eq.f32.partialorder %v390, 0.0
        %v396 = vand.u32 %v390, 2147483648
        %v397 = vsel %vm395, %v396, %v394
        %v398 = vmul.f32 %v387, %v397
        %v399 = vadd.f32 %v389, %v398
        %vm400 = vcmask 64512
        %v401 = vsel %vm400, %v399, -inf
        %402 = vmax.xlane.f32.xlu0 %v401
        %v403 = vpop.xlane.xlu0 %402
        %v404 = vadd.f32 %v403, 1.0
        %v405 = vmul.f32 %v388, %v404
        %v406 = vadd.f32 %v399, %v405
        %407 = vst.msk [vmem:[%s255] sm:$0xff] %vm400, %v406
        %s408 = sand.u32 %s148, 1
        %s409 = scalar_lea.sflag [#allocation3], %s408
        %s410 = sand.u32 %s148, 1
        %s411 = smul.addr %s410, 8
        %s412 = scalar_lea.vmem [#allocation2], %s411
        // Predicated region
        $region37: #{tpu_custom_call.1} parent=35 // pred_check
          %p413 = pneg %p158
        $region38: #{tpu_custom_call.1} parent=35 // pred_check_branch
          %415 = sbr.rel (%p413) target = $region40
        $region39: #{tpu_custom_call.1} parent=35 // pred_region
          %s417 = ssub.s32 128, 128
          %418 = vsyncadd %s409, %s417
          %s419 = sadd.s32 %s23, %s22
          %s420 = smul.addr %s419, 128
          %s421 = scalar_lea.hbm %s4, %s420
          %s423 = sshll.u32 %s412, 4
          %s424 = int_to_ptr.vmem [resolvable:$true] %s423
          %426 = dma.vmem_to_hbm [thread:$0]  %s424, 128, %s421, %s409
        $region40: #{tpu_custom_call.1} parent=35 // pred_fallthru
          _
      $region36: #{tpu_custom_call.1} parent=5 // pred_fallthru
        _
      %p427 = scmp.le.s32.totalorder 2, %s13
      // Predicated region
      $region41: #{tpu_custom_call.1} parent=5 // pred_check
        %p428 = pneg %p427
      $region42: #{tpu_custom_call.1} parent=5 // pred_check_branch
        %430 = sbr.rel (%p428) target = $region44
      $region43: #{tpu_custom_call.1} parent=5 // pred_region
        %s431 = ssub.s32 %s13, 2
        // Predicated region
        $region45: #{tpu_custom_call.1} parent=43 // pred_check
          %p432 = pneg %p164
        $region46: #{tpu_custom_call.1} parent=43 // pred_check_branch
          %434 = sbr.rel (%p432) target = $region48
        $region47: #{tpu_custom_call.1} parent=43 // pred_region
          %s435 = sand.u32 %s149, 1
          %s436 = scalar_lea.sflag [#allocation3], %s435
          %s437 = sand.u32 %s149, 1
          %s438 = smul.addr %s437, 8
          %s439 = scalar_lea.vmem [#allocation2], %s438
          %440 = dma.done %s436, 128
        $region48: #{tpu_custom_call.1} parent=43 // pred_fallthru
          _
      $region44: #{tpu_custom_call.1} parent=5 // pred_fallthru
        _
    $region6: #{tpu_custom_call.1} parent=1 // loop_footer
      %s17 = sadd.s32 1, %s13
    $region7: #{tpu_custom_call.1} parent=1 // loop_footer_branch
      %12 = sbr.rel target = $region3
    $region8: #{tpu_custom_call.1} parent=1 // loop_exit
      _
    %441 = vsyncpa [#allocation3], 1
    %s442 = scalar_lea.sflag [#allocation3], 1
    %443 = vsyncpa %s442, 1

</llo_original>
